<compile_context>
chip_gen: v5e
topology: v5e:2x2
jax: 0.10.0
libtpu: 0.0.40
codegen_flags: <defaults>
</compile_context>

<pallas_src>
import jax
import jax.numpy as jnp
from jax.experimental import pallas as pl
from jax.experimental.pallas import tpu as pltpu


def _kld_row_kernel(mu_q_ref, logvar_q_ref, mu_p_ref, logvar_p_ref, out_ref):
    """One (block_rows, D) tile -> (block_rows, 1) row sums of the KL term."""
    mq = mu_q_ref[...].astype(jnp.float32)
    mp = mu_p_ref[...].astype(jnp.float32)
    lq = logvar_q_ref[...].astype(jnp.float32)
    lp = logvar_p_ref[...].astype(jnp.float32)

    diff = mq - mp
    log_ratio = lq - lp
    # 1 + lq - lp - (mq - mp)^2 * exp(-lp) - exp(lq - lp)
    term = 1.0 + log_ratio - diff * diff * jnp.exp(-lp) - jnp.exp(log_ratio)
    out_ref[...] = jnp.sum(term, axis=1, keepdims=True)


def kl_div_loss(mu_q, logvar_q, mu_p, logvar_p, *,
                block_rows=None, vmem_budget_bytes=24 * 1024 * 1024):
    """Pallas TPU implementation of the module's forward pass. Returns a scalar."""
    assert mu_q.shape == logvar_q.shape == mu_p.shape == logvar_p.shape
    assert mu_q.ndim == 2, "expected (batch, latent_dim) inputs"
    B, D = mu_q.shape
    itemsize = jnp.dtype(mu_q.dtype).itemsize

    if block_rows is None:
        # 4 inputs x 2 pipeline buffers of (block_rows, D) must fit the budget.
        per_row_bytes = 4 * 2 * D * itemsize
        block_rows = max(8, (vmem_budget_bytes // per_row_bytes) // 8 * 8)

    if block_rows >= B:
        block_rows = B          # single block; full-dim blocks need no alignment
        num_blocks = 1
    else:
        # Balance the blocks across the grid, keeping the sublane dim % 8 == 0.
        num_blocks = pl.cdiv(B, block_rows)
        block_rows = min(B, pl.cdiv(pl.cdiv(B, num_blocks), 8) * 8)
        num_blocks = pl.cdiv(B, block_rows)

    in_spec = pl.BlockSpec((block_rows, D), lambda i: (i, 0))
    out_spec = pl.BlockSpec((block_rows, 1), lambda i: (i, 0))

    row_sums = pl.pallas_call(
        _kld_row_kernel,
        out_shape=jax.ShapeDtypeStruct((B, 1), jnp.float32),
        grid_spec=pltpu.PrefetchScalarGridSpec(
            num_scalar_prefetch=0,
            grid=(num_blocks,),
            in_specs=[in_spec, in_spec, in_spec, in_spec],
            out_specs=out_spec,
        ),
        compiler_params=pltpu.CompilerParams(
            dimension_semantics=("parallel",),   # distinct output blocks -> safe
            vmem_limit_bytes=48 * 1024 * 1024),
    )(mu_q, logvar_q, mu_p, logvar_p)

    # kld_per_sample = -0.5 * row_sum; loss = mean over batch.
    return -0.5 * jnp.mean(row_sums)


if __name__ == "__main__":
    def ref_loss(mu_q, logvar_q, mu_p, logvar_p):
        kld = -0.5 * jnp.sum(
            1.0 + logvar_q - logvar_p
            - (mu_q - mu_p) ** 2 / jnp.exp(logvar_p)
            - jnp.exp(logvar_q) / jnp.exp(logvar_p), axis=1)
        return jnp.mean(kld)

    def make_inputs(key, B, D, dtype=jnp.float32):
        k1, k2, k3, k4 = jax.random.split(key, 4)
        mu_q = jax.random.normal(k1, (B, D), dtype=jnp.float32).astype(dtype)
        lq = (0.1 * jax.random.normal(k2, (B, D), dtype=jnp.float32)).astype(dtype)
        mu_p = jax.random.normal(k3, (B, D), dtype=jnp.float32).astype(dtype)
        lp = (0.1 * jax.random.normal(k4, (B, D), dtype=jnp.float32)).astype(dtype)
        return mu_q, lq, mu_p, lp

    key = jax.random.PRNGKey(0)

    # Case 1: small canonical (batch, latent_dim) shape -> single full block.
    key, k = jax.random.split(key)
    args = make_inputs(k, 16, 32)
    loss = jax.block_until_ready(kl_div_loss(*args))
    ref = ref_loss(*args)
    assert jnp.allclose(loss, ref, rtol=1e-4, atol=1e-4), (loss, ref)

    # Case 2: forced small block_rows -> multi-block grid with a ragged tail
    # (B=20 not a multiple of block_rows=8).
    key, k = jax.random.split(key)
    args = make_inputs(k, 20, 300)
    loss = jax.block_until_ready(kl_div_loss(*args, block_rows=8))
    ref = ref_loss(*args)
    assert jnp.allclose(loss, ref, rtol=1e-4, atol=1e-4), (loss, ref)

    # Case 3: bf16 inputs accepted directly (kernel upcasts to f32 internally).
    key, k = jax.random.split(key)
    args_bf16 = make_inputs(k, 16, 64, dtype=jnp.bfloat16)
    loss = jax.block_until_ready(kl_div_loss(*args_bf16))
    ref = ref_loss(*(a.astype(jnp.float32) for a in args_bf16))
    assert jnp.allclose(loss, ref, rtol=1e-4, atol=1e-4), (loss, ref)

    print("KERNEL_OK")
</pallas_src>

<mosaic_0001>
module attributes {stable_mosaic.version = 11 : i64} {
  func.func @_kld_row_kernel(%arg0: i32, %arg1: memref<16x32xf32, #tpu.memory_space<vmem>>, %arg2: memref<16x32xf32, #tpu.memory_space<vmem>>, %arg3: memref<16x32xf32, #tpu.memory_space<vmem>>, %arg4: memref<16x32xf32, #tpu.memory_space<vmem>>, %arg5: memref<16x1xf32, #tpu.memory_space<vmem>>) attributes {dimension_semantics = [#tpu.dimension_semantics<parallel>], iteration_bounds = array<i64: 1>, scalar_prefetch = 0 : i64, scratch_operands = 0 : i64, tpu.core_type = #tpu.core_type<tc>, window_params = [{transform_indices = @transform_0, window_bounds = array<i64: 16, 32>}, {transform_indices = @transform_1, window_bounds = array<i64: 16, 32>}, {transform_indices = @transform_2, window_bounds = array<i64: 16, 32>}, {transform_indices = @transform_3, window_bounds = array<i64: 16, 32>}, {transform_indices = @transform_4, window_bounds = array<i64: 16, 1>}]} {
    %c0 = arith.constant 0 : index
    %c0_0 = arith.constant 0 : index
    %0 = vector.load %arg1[%c0, %c0_0] : memref<16x32xf32, #tpu.memory_space<vmem>>, vector<16x32xf32>
    %c0_1 = arith.constant 0 : index
    %c0_2 = arith.constant 0 : index
    %1 = vector.load %arg3[%c0_1, %c0_2] : memref<16x32xf32, #tpu.memory_space<vmem>>, vector<16x32xf32>
    %c0_3 = arith.constant 0 : index
    %c0_4 = arith.constant 0 : index
    %2 = vector.load %arg2[%c0_3, %c0_4] : memref<16x32xf32, #tpu.memory_space<vmem>>, vector<16x32xf32>
    %c0_5 = arith.constant 0 : index
    %c0_6 = arith.constant 0 : index
    %3 = vector.load %arg4[%c0_5, %c0_6] : memref<16x32xf32, #tpu.memory_space<vmem>>, vector<16x32xf32>
    %4 = arith.subf %0, %1 : vector<16x32xf32>
    %5 = arith.subf %2, %3 : vector<16x32xf32>
    %cst = arith.constant 1.000000e+00 : f32
    %6 = vector.broadcast %cst : f32 to vector<16x32xf32>
    %7 = arith.addf %6, %5 : vector<16x32xf32>
    %8 = arith.mulf %4, %4 : vector<16x32xf32>
    %cst_7 = arith.constant 0.000000e+00 : f32
    %9 = vector.broadcast %cst_7 : f32 to vector<16x32xf32>
    %10 = arith.subf %9, %3 : vector<16x32xf32>
    %11 = math.exp %10 : vector<16x32xf32>
    %12 = arith.mulf %8, %11 : vector<16x32xf32>
    %13 = arith.subf %7, %12 : vector<16x32xf32>
    %14 = math.exp %5 : vector<16x32xf32>
    %15 = arith.subf %13, %14 : vector<16x32xf32>
    %cst_8 = arith.constant dense<0.000000e+00> : vector<16xf32>
    %16 = vector.multi_reduction <add>, %15, %cst_8 [1] : vector<16x32xf32> to vector<16xf32>
    %17 = vector.shape_cast %16 : vector<16xf32> to vector<16x1xf32>
    %c0_9 = arith.constant 0 : index
    %c0_10 = arith.constant 0 : index
    %18 = vector.load %arg5[%c0_9, %c0_10] : memref<16x1xf32, #tpu.memory_space<vmem>>, vector<16x1xf32>
    tpu.vector_store %arg5[%c0_9, %c0_10], %17 {strides = array<i32>} : memref<16x1xf32, #tpu.memory_space<vmem>>, vector<16x1xf32>,
    return
  }
  func.func @transform_0(%arg0: i32) -> (i32, i32) {
    %c0_i32 = arith.constant 0 : i32
    %c0_i32_0 = arith.constant 0 : i32
    return %arg0, %c0_i32 : i32, i32
  }
  func.func @transform_1(%arg0: i32) -> (i32, i32) {
    %c0_i32 = arith.constant 0 : i32
    %c0_i32_0 = arith.constant 0 : i32
    return %arg0, %c0_i32 : i32, i32
  }
  func.func @transform_2(%arg0: i32) -> (i32, i32) {
    %c0_i32 = arith.constant 0 : i32
    %c0_i32_0 = arith.constant 0 : i32
    return %arg0, %c0_i32 : i32, i32
  }
  func.func @transform_3(%arg0: i32) -> (i32, i32) {
    %c0_i32 = arith.constant 0 : i32
    %c0_i32_0 = arith.constant 0 : i32
    return %arg0, %c0_i32 : i32, i32
  }
  func.func @transform_4(%arg0: i32) -> (i32, i32) {
    %c0_i32 = arith.constant 0 : i32
    %c0_i32_0 = arith.constant 0 : i32
    return %arg0, %c0_i32 : i32, i32
  }
}

</mosaic_0001>

<llo_original>
// kernel: tpu_custom_call.1
$region0: #{tpu_custom_call.1}
  #allocation0 [shape = 'u32[]', space=smem, size = 0x4, offset = 0x4, fixed_abs, tag = 'smem constant byte address 0x4 - core index']
  #allocation1 [shape = 'u32[72,128]{1,0:T(1,128)}', space=vmem, size = 0x9000, scoped, tag = 'internal scratch']
  %s0 = inlined_call_operand.hbm [shape: f32[16,32], index: 0, kind: input, shape index: {}]
  %s1 = inlined_call_operand.hbm [shape: f32[16,32], index: 1, kind: input, shape index: {}]
  %s2 = inlined_call_operand.hbm [shape: f32[16,32], index: 2, kind: input, shape index: {}]
  %s3 = inlined_call_operand.hbm [shape: f32[16,32], index: 3, kind: input, shape index: {}]
  %s4 = inlined_call_operand.vmem [shape: f32[16,1], index: 4, kind: output, shape index: {}]
  %s5 = sld [smem:[#allocation0]]
  $region42: #{tpu_custom_call.1} parent=0
    _
  %s7 = ssub.s32 1, %s5
  %s8 = scalar_select 0, %s7, %s5
  $region1: #{tpu_custom_call.1} parent=0
    #allocation2 [shape = 'u8[8192]{0}', space=vmem, size = 0x2000, scoped, tag = 'input window, operand 0, single buffered']
    #allocation3 [shape = 's32[1]{0}', space=sflag, size = 0x4, scoped, tag = 'scoped memory for tpu_custom_call.1']
    #allocation4 [shape = 'u8[8192]{0}', space=vmem, size = 0x2000, scoped, tag = 'input window, operand 1, single buffered']
    #allocation5 [shape = 's32[1]{0}', space=sflag, size = 0x4, scoped, tag = 'scoped memory for tpu_custom_call.1']
    #allocation6 [shape = 'u8[8192]{0}', space=vmem, size = 0x2000, scoped, tag = 'input window, operand 2, single buffered']
    #allocation7 [shape = 'u8[8192]{0}', space=vmem, size = 0x2000, scoped, tag = 'input window, operand 3, single buffered']
    #allocation8 [shape = 's32[1]{0}', space=sflag, size = 0x4, scoped, tag = 'scoped memory for tpu_custom_call.1']
    %9 = vsyncpa [#allocation3], 0
    %10 = vsyncpa [#allocation5], 0
    %11 = vsyncpa [#allocation8], 0
    // Predicated region
    $region2: #{tpu_custom_call.1} parent=1 // pred_check
      _
    $region3: #{tpu_custom_call.1} parent=1 // pred_check_branch
      %13 = sbr.rel (0) target = $region5
    $region4: #{tpu_custom_call.1} parent=1 // pred_region
      %15 = vsyncadd [#allocation3], 0
      %s16 = sshll.u32 %s0, 4
      %s17 = int_to_ptr.hbm [resolvable:$true] %s16
      %s18 = sshll.u32 [#allocation2], 4
      %s19 = int_to_ptr.vmem [resolvable:$true] %s18
      %24 = dma.hbm_to_vmem [thread:$0]  %s17, 256, %s19, [#allocation3], 128, 128, 8
    $region5: #{tpu_custom_call.1} parent=1 // pred_fallthru
      _
    // Predicated region
    $region6: #{tpu_custom_call.1} parent=1 // pred_check
      _
    $region7: #{tpu_custom_call.1} parent=1 // pred_check_branch
      %26 = sbr.rel (0) target = $region9
    $region8: #{tpu_custom_call.1} parent=1 // pred_region
      %28 = vsyncadd [#allocation5], 0
      %s29 = sshll.u32 %s1, 4
      %s30 = int_to_ptr.hbm [resolvable:$true] %s29
      %s31 = sshll.u32 [#allocation4], 4
      %s32 = int_to_ptr.vmem [resolvable:$true] %s31
      %37 = dma.hbm_to_vmem [thread:$0]  %s30, 256, %s32, [#allocation5], 128, 128, 8
    $region9: #{tpu_custom_call.1} parent=1 // pred_fallthru
      _
    // Predicated region
    $region10: #{tpu_custom_call.1} parent=1 // pred_check
      _
    $region11: #{tpu_custom_call.1} parent=1 // pred_check_branch
      %39 = sbr.rel (0) target = $region13
    $region12: #{tpu_custom_call.1} parent=1 // pred_region
      %41 = vsyncadd [#allocation5], 0
      %s42 = sshll.u32 %s2, 4
      %s43 = int_to_ptr.hbm [resolvable:$true] %s42
      %s44 = sshll.u32 [#allocation6], 4
      %s45 = int_to_ptr.vmem [resolvable:$true] %s44
      %50 = dma.hbm_to_vmem [thread:$0]  %s43, 256, %s45, [#allocation5], 128, 128, 8
    $region13: #{tpu_custom_call.1} parent=1 // pred_fallthru
      _
    // Predicated region
    $region14: #{tpu_custom_call.1} parent=1 // pred_check
      _
    $region15: #{tpu_custom_call.1} parent=1 // pred_check_branch
      %52 = sbr.rel (0) target = $region17
    $region16: #{tpu_custom_call.1} parent=1 // pred_region
      %54 = vsyncadd [#allocation8], 0
      %s55 = sshll.u32 %s3, 4
      %s56 = int_to_ptr.hbm [resolvable:$true] %s55
      %s57 = sshll.u32 [#allocation7], 4
      %s58 = int_to_ptr.vmem [resolvable:$true] %s57
      %63 = dma.hbm_to_vmem [thread:$0]  %s56, 256, %s58, [#allocation8], 128, 128, 8
    $region17: #{tpu_custom_call.1} parent=1 // pred_fallthru
      _
    // Predicated region
    $region18: #{tpu_custom_call.1} parent=1 // pred_check
      _
    $region19: #{tpu_custom_call.1} parent=1 // pred_check_branch
      %65 = sbr.rel (0) target = $region21
    $region20: #{tpu_custom_call.1} parent=1 // pred_region
      %67 = dma.done [#allocation3], 256
    $region21: #{tpu_custom_call.1} parent=1 // pred_fallthru
      _
    // Predicated region
    $region22: #{tpu_custom_call.1} parent=1 // pred_check
      _
    $region23: #{tpu_custom_call.1} parent=1 // pred_check_branch
      %69 = sbr.rel (0) target = $region25
    $region24: #{tpu_custom_call.1} parent=1 // pred_region
      %71 = dma.done [#allocation5], 256
    $region25: #{tpu_custom_call.1} parent=1 // pred_fallthru
      _
    // Predicated region
    $region26: #{tpu_custom_call.1} parent=1 // pred_check
      _
    $region27: #{tpu_custom_call.1} parent=1 // pred_check_branch
      %73 = sbr.rel (0) target = $region29
    $region28: #{tpu_custom_call.1} parent=1 // pred_region
      %75 = dma.done [#allocation5], 256
    $region29: #{tpu_custom_call.1} parent=1 // pred_fallthru
      _
    // Predicated region
    $region30: #{tpu_custom_call.1} parent=1 // pred_check
      _
    $region31: #{tpu_custom_call.1} parent=1 // pred_check_branch
      %77 = sbr.rel (0) target = $region33
    $region32: #{tpu_custom_call.1} parent=1 // pred_region
      %79 = dma.done [#allocation8], 256
    $region33: #{tpu_custom_call.1} parent=1 // pred_fallthru
      _
    %v80 = vld [vmem:[#allocation2] sm:$0xff]
    %v81 = vld [vmem:[#allocation2 + $0x8] sm:$0xff]
    %v82 = vld [vmem:[#allocation6] sm:$0xff]
    %v83 = vld [vmem:[#allocation6 + $0x8] sm:$0xff]
    %v84 = vld [vmem:[#allocation4] sm:$0xff]
    %v85 = vld [vmem:[#allocation4 + $0x8] sm:$0xff]
    %v86 = vld [vmem:[#allocation7] sm:$0xff]
    %v87 = vld [vmem:[#allocation7 + $0x8] sm:$0xff]
    %v88 = vsub.f32 %v80, %v82
    %v89 = vsub.f32 %v81, %v83
    %v90 = vsub.f32 %v84, %v86
    %v91 = vsub.f32 %v85, %v87
    %v92 = vadd.f32 %v90, 1.0
    %v93 = vadd.f32 %v91, 1.0
    %v94 = vmul.f32 %v88, %v88
    %v95 = vmul.f32 %v89, %v89
    %v96 = vsub.f32 0.0, %v86
    %v97 = vsub.f32 0.0, %v87
    %v98 = vmul.f32 %v96, 1.442695
    %v99 = vpow.pop %v98
    %v100 = vmul.f32 %v97, 1.442695
    %v101 = vpow.pop %v100
    %v102 = vmul.f32 %v94, %v99
    %v103 = vmul.f32 %v95, %v101
    %v104 = vsub.f32 %v92, %v102
    %v105 = vsub.f32 %v93, %v103
    %v106 = vmul.f32 %v90, 1.442695
    %v107 = vpow.pop %v106
    %v108 = vmul.f32 %v91, 1.442695
    %v109 = vpow.pop %v108
    %v110 = vsub.f32 %v104, %v107
    %v111 = vsub.f32 %v105, %v109
    %vm112 = vcmask 261120
    %v113 = vsel %vm112, %v110, 0.0
    %114 = vadd.xlane.f32.xlu0 %v113
    %v115 = vpop.xlane.xlu0 %114
    %v116 = vsel %vm112, %v111, 0.0
    %117 = vadd.xlane.f32.xlu0 %v116
    %v118 = vpop.xlane.xlu0 %117
    %vm119 = vcmask 7168
    %120 = vst.msk [vmem:[%s4] sm:$0xff] %vm119, %v115
    %121 = vst.msk [vmem:[%s4 + $0x8] sm:$0xff] %vm119, %v118
    // Predicated region
    $region34: #{tpu_custom_call.1} parent=1 // pred_check
      _
    $region35: #{tpu_custom_call.1} parent=1 // pred_check_branch
      %123 = sbr.rel (0) target = $region37
    $region36: #{tpu_custom_call.1} parent=1 // pred_region
      _
    $region37: #{tpu_custom_call.1} parent=1 // pred_fallthru
      _
    // Predicated region
    $region38: #{tpu_custom_call.1} parent=1 // pred_check
      _
    $region39: #{tpu_custom_call.1} parent=1 // pred_check_branch
      %125 = sbr.rel (0) target = $region41
    $region40: #{tpu_custom_call.1} parent=1 // pred_region
      _
    $region41: #{tpu_custom_call.1} parent=1 // pred_fallthru
      _
    %126 = vsyncpa [#allocation3], 1
    %127 = vsyncpa [#allocation5], 1
    %128 = vsyncpa [#allocation8], 1

</llo_original>
